<compile_context>
chip_gen: v7x
topology: tpu7x:2x2x1
jax: 0.10.0
libtpu: 0.0.40
codegen_flags: <defaults>
</compile_context>

<pallas_src>
import jax
import jax.numpy as jnp
from jax.experimental import pallas as pl
from jax.experimental.pallas import tpu as pltpu

# ---- small, TPU-friendly hyper-parameters consistent with the module ----
N = 8            # number of graph nodes
NODE_DIM = 16    # nodeDim
HIDDEN_DIM = 32  # hiddenDim
INPUT_NUM = 1    # inputNum
ATTS_NUM = 2     # attsNum
OUTPUT_NUM = 1   # outputNum

OUT_W = 128      # lane-dense output slab width (holds 2H + 3 = 67 used lanes)


# ---------------------------------------------------------------------------
# Single fused kernel: whole forward pass, everything in VMEM.
# ---------------------------------------------------------------------------
def caugramer_kernel(adj_ref, x_ref, t2_ref,
                     wx_ref, bx_ref,        # XREP layer    (D, H), (1, H)
                     wt_ref, bt_ref,        # TREP layers   (A, H, H), (A, 1, H)
                     wo_ref, bo_ref,        # OUT_t0|OUT_t1 (2H+1, 2H), (1, 2H)
                     wp_ref, bp_ref,        # PRED blockdiag(2H, 2), (1, 2)
                     out_ref):              # (N, OUT_W) packed output slab
    adj = adj_ref[...]                                     # (N, N)
    t2 = t2_ref[...]                                       # (N, 2) = [t | 1]

    # neighborAverageT = (adj @ t) / sum(adj, 1)
    # numerator and degree come out of one MXU op: adj @ [t | 1]
    nbr = jnp.dot(adj, t2, preferred_element_type=jnp.float32)   # (N, 2)
    n_avg_t = nbr[:, 0:1] * pl.reciprocal(nbr[:, 1:2], approx=True)

    # XREP (inputNum == 1): relu((adj + I) @ (x @ Wx) + bx), self-loop folded.
    s = jnp.dot(x_ref[...], wx_ref[...], preferred_element_type=jnp.float32)
    xrep = jnp.maximum(
        jnp.dot(adj, s, preferred_element_type=jnp.float32) + s + bx_ref[...],
        0.0)

    # TREP layers: relu(adj @ (h @ Wt_i) + bt_i)
    trep = xrep
    for i in range(ATTS_NUM):
        s = jnp.dot(trep, wt_ref[i], preferred_element_type=jnp.float32)
        trep = jnp.maximum(
            jnp.dot(adj, s, preferred_element_type=jnp.float32) + bt_ref[i],
            0.0)

    rep = jnp.concatenate([xrep, trep], axis=1)            # (N, 2H)
    rep1 = jnp.concatenate([rep, n_avg_t], axis=1)         # (N, 2H + 1)

    # OUT_t0 / OUT_t1 fused (same input rep1): relu(rep1 @ [Wo0 | Wo1] + b)
    out01 = jnp.maximum(
        jnp.dot(rep1, wo_ref[...], preferred_element_type=jnp.float32)
        + bo_ref[...],
        0.0)                                               # (N, 2H)

    # PRED_t0 / PRED_t1 fused via block-diagonal weights -> (N, 2)
    p = jnp.dot(out01, wp_ref[...],
                preferred_element_type=jnp.float32) + bp_ref[...]
    p0 = p[:, 0:1]
    p1 = p[:, 1:2]
    py = jnp.where(t2[:, 0:1] > 0, p1, p0)                 # where(t > 0, y1, y0)

    # Pack everything into one lane-dense slab: [rep | y0 | y1 | y | 0-pad]
    out_ref[...] = jnp.zeros_like(out_ref)
    out_ref[:, 0:2 * HIDDEN_DIM] = rep
    out_ref[:, 2 * HIDDEN_DIM:2 * HIDDEN_DIM + 3] = jnp.concatenate(
        [p0, p1, py], axis=1)


# ---------------------------------------------------------------------------
# Deterministic parameter initialization (shapes follow the module __init__).
# Linear weights are stored (fan_in, fan_out) so the kernel computes x @ W + b.
# ---------------------------------------------------------------------------
def init_params(key):
    def lin(key, fan_in, fan_out):
        kw, kb = jax.random.split(key)
        w = jax.random.normal(kw, (fan_in, fan_out), jnp.float32) * 0.1
        b = jax.random.normal(kb, (1, fan_out), jnp.float32) * 0.1
        return w, b

    n_layers = INPUT_NUM + ATTS_NUM + 2 * OUTPUT_NUM + 2
    keys = list(jax.random.split(key, n_layers))
    params = {"xrep": [], "trep": [], "out_t0": [], "out_t1": []}

    dims_x = [NODE_DIM] + [HIDDEN_DIM] * INPUT_NUM
    for i in range(INPUT_NUM):
        params["xrep"].append(lin(keys.pop(0), dims_x[i], HIDDEN_DIM))
    for _ in range(ATTS_NUM):
        params["trep"].append(lin(keys.pop(0), HIDDEN_DIM, HIDDEN_DIM))
    dims_o = [2 * HIDDEN_DIM + 1] + [HIDDEN_DIM] * OUTPUT_NUM
    for i in range(OUTPUT_NUM):
        params["out_t0"].append(lin(keys.pop(0), dims_o[i], HIDDEN_DIM))
        params["out_t1"].append(lin(keys.pop(0), dims_o[i], HIDDEN_DIM))
    params["pred_t0"] = lin(keys.pop(0), HIDDEN_DIM, 1)
    params["pred_t1"] = lin(keys.pop(0), HIDDEN_DIM, 1)
    return params


# ---------------------------------------------------------------------------
# Forward pass (mirrors CauGramer.forward, non-attention / non-FCatt path).
# One fused pallas_call; host side only reshapes / concatenates parameters.
# ---------------------------------------------------------------------------
def caugramer_forward(params, adj, x, t):
    assert INPUT_NUM == 1 and OUTPUT_NUM == 1, "kernel fused for defaults"
    n = adj.shape[0]
    adj = adj.astype(jnp.float32)
    x = x.astype(jnp.float32)

    # [t | 1] so one MXU op gives both (adj @ t) and the node degrees.
    t_col = t.reshape(n, 1).astype(jnp.float32)
    t2 = jnp.concatenate([t_col, jnp.ones((n, 1), jnp.float32)], axis=1)

    wx, bx = params["xrep"][0]
    wt = jnp.stack([w for w, _ in params["trep"]])       # (A, H, H)
    bt = jnp.stack([b for _, b in params["trep"]])       # (A, 1, H)

    w_o0, b_o0 = params["out_t0"][0]
    w_o1, b_o1 = params["out_t1"][0]
    wo = jnp.concatenate([w_o0, w_o1], axis=1)           # (2H+1, 2H)
    bo = jnp.concatenate([b_o0, b_o1], axis=1)           # (1, 2H)

    wp0, bp0 = params["pred_t0"]
    wp1, bp1 = params["pred_t1"]
    zeros = jnp.zeros_like(wp0)
    wp = jnp.concatenate(
        [jnp.concatenate([wp0, zeros], axis=1),
         jnp.concatenate([zeros, wp1], axis=1)], axis=0)  # (2H, 2) block-diag
    bp = jnp.concatenate([bp0, bp1], axis=1)              # (1, 2)

    vmem = pl.BlockSpec(memory_space=pltpu.MemorySpace.VMEM)
    out = pl.pallas_call(
        caugramer_kernel,
        out_shape=jax.ShapeDtypeStruct((n, OUT_W), jnp.float32),
        in_specs=[vmem] * 11,
        out_specs=vmem,
    )(adj, x, t2, wx, bx, wt, bt, wo, bo, wp, bp)

    rep = out[:, :2 * HIDDEN_DIM]
    pred_y0 = out[:, 2 * HIDDEN_DIM]
    pred_y1 = out[:, 2 * HIDDEN_DIM + 1]
    pred_y = out[:, 2 * HIDDEN_DIM + 2]

    # FCatt_use = False branch of the return
    return pred_y0, pred_y1, pred_y, rep, -1, -1


if __name__ == "__main__":
    key = jax.random.PRNGKey(0)
    k_adj, k_x, k_t, k_p = jax.random.split(key, 4)

    # symmetric binary adjacency, ring guarantees every node has >= 1 neighbor
    rand = (jax.random.uniform(k_adj, (N, N)) > 0.7).astype(jnp.float32)
    adj = jnp.maximum(rand, rand.T)
    ring = (jnp.eye(N, k=1) + jnp.eye(N, k=-1) +
            jnp.eye(N, k=N - 1) + jnp.eye(N, k=-(N - 1)))
    adj = jnp.minimum(adj + ring, 1.0) * (1.0 - jnp.eye(N))
    adj = adj.astype(jnp.float32)

    x = jax.random.normal(k_x, (N, NODE_DIM), jnp.float32)
    t = (jax.random.uniform(k_t, (N,)) > 0.5).astype(jnp.float32)

    params = init_params(k_p)
    pred_y0, pred_y1, pred_y, rep, att, pt = caugramer_forward(params, adj, x, t)
    jax.block_until_ready((pred_y0, pred_y1, pred_y, rep))
    assert pred_y0.shape == (N,) and pred_y1.shape == (N,) and pred_y.shape == (N,)
    assert rep.shape == (N, 2 * HIDDEN_DIM)
    print("KERNEL_OK")
</pallas_src>

<mosaic_0001>
module attributes {stable_mosaic.version = 11 : i64} {
  func.func @caugramer_kernel(%arg0: memref<8x8xf32, #tpu.memory_space<vmem>>, %arg1: memref<8x16xf32, #tpu.memory_space<vmem>>, %arg2: memref<8x2xf32, #tpu.memory_space<vmem>>, %arg3: memref<16x32xf32, #tpu.memory_space<vmem>>, %arg4: memref<1x32xf32, #tpu.memory_space<vmem>>, %arg5: memref<2x32x32xf32, #tpu.memory_space<vmem>>, %arg6: memref<2x1x32xf32, #tpu.memory_space<vmem>>, %arg7: memref<65x64xf32, #tpu.memory_space<vmem>>, %arg8: memref<1x64xf32, #tpu.memory_space<vmem>>, %arg9: memref<64x2xf32, #tpu.memory_space<vmem>>, %arg10: memref<1x2xf32, #tpu.memory_space<vmem>>, %arg11: memref<8x128xf32, #tpu.memory_space<vmem>>) attributes {dimension_semantics = [], scalar_prefetch = 0 : i64, scratch_operands = 0 : i64, tpu.core_type = #tpu.core_type<tc>} {
    %c0 = arith.constant 0 : index
    %c0_0 = arith.constant 0 : index
    %0 = vector.load %arg0[%c0, %c0_0] : memref<8x8xf32, #tpu.memory_space<vmem>>, vector<8x8xf32>
    %c0_1 = arith.constant 0 : index
    %c0_2 = arith.constant 0 : index
    %1 = vector.load %arg2[%c0_1, %c0_2] : memref<8x2xf32, #tpu.memory_space<vmem>>, vector<8x2xf32>
    %cst = arith.constant dense<0.000000e+00> : vector<8x2xf32>
    %2 = tpu.matmul %0, %1, %cst {dimension_numbers = #tpu.dot_dimension_numbers<[1], [0], [0], [1], [0, 0, 1, 1], [], []>} : vector<8x8xf32>, vector<8x2xf32>, vector<8x2xf32> -> vector<8x2xf32>
    %3 = vector.extract_strided_slice %2 {offsets = [0, 0], sizes = [8, 1], strides = [1, 1]} : vector<8x2xf32> to vector<8x1xf32>
    %4 = vector.extract_strided_slice %2 {offsets = [0, 1], sizes = [8, 1], strides = [1, 1]} : vector<8x2xf32> to vector<8x1xf32>
    %5 = tpu.reciprocal %4 {approx = true} : vector<8x1xf32> -> vector<8x1xf32>
    %6 = arith.mulf %3, %5 : vector<8x1xf32>
    %c0_3 = arith.constant 0 : index
    %c0_4 = arith.constant 0 : index
    %7 = vector.load %arg1[%c0_3, %c0_4] : memref<8x16xf32, #tpu.memory_space<vmem>>, vector<8x16xf32>
    %c0_5 = arith.constant 0 : index
    %c0_6 = arith.constant 0 : index
    %8 = vector.load %arg3[%c0_5, %c0_6] : memref<16x32xf32, #tpu.memory_space<vmem>>, vector<16x32xf32>
    %cst_7 = arith.constant dense<0.000000e+00> : vector<8x32xf32>
    %9 = tpu.matmul %7, %8, %cst_7 {dimension_numbers = #tpu.dot_dimension_numbers<[1], [0], [0], [1], [0, 0, 1, 1], [], []>} : vector<8x16xf32>, vector<16x32xf32>, vector<8x32xf32> -> vector<8x32xf32>
    %cst_8 = arith.constant dense<0.000000e+00> : vector<8x32xf32>
    %10 = tpu.matmul %0, %9, %cst_8 {dimension_numbers = #tpu.dot_dimension_numbers<[1], [0], [0], [1], [0, 0, 1, 1], [], []>} : vector<8x8xf32>, vector<8x32xf32>, vector<8x32xf32> -> vector<8x32xf32>
    %11 = arith.addf %10, %9 : vector<8x32xf32>
    %c0_9 = arith.constant 0 : index
    %c0_10 = arith.constant 0 : index
    %12 = vector.load %arg4[%c0_9, %c0_10] : memref<1x32xf32, #tpu.memory_space<vmem>>, vector<1x32xf32>
    %13 = vector.broadcast %12 : vector<1x32xf32> to vector<8x32xf32>
    %14 = arith.addf %11, %13 : vector<8x32xf32>
    %cst_11 = arith.constant 0.000000e+00 : f32
    %15 = vector.broadcast %cst_11 : f32 to vector<8x32xf32>
    %16 = arith.maximumf %14, %15 : vector<8x32xf32>
    %c0_12 = arith.constant 0 : index
    %c0_13 = arith.constant 0 : index
    %c0_14 = arith.constant 0 : index
    %17 = vector.load %arg5[%c0_12, %c0_13, %c0_14] : memref<2x32x32xf32, #tpu.memory_space<vmem>>, vector<1x32x32xf32>
    %18 = vector.shape_cast %17 : vector<1x32x32xf32> to vector<32x32xf32>
    %cst_15 = arith.constant dense<0.000000e+00> : vector<8x32xf32>
    %19 = tpu.matmul %16, %18, %cst_15 {dimension_numbers = #tpu.dot_dimension_numbers<[1], [0], [0], [1], [0, 0, 1, 1], [], []>} : vector<8x32xf32>, vector<32x32xf32>, vector<8x32xf32> -> vector<8x32xf32>
    %cst_16 = arith.constant dense<0.000000e+00> : vector<8x32xf32>
    %20 = tpu.matmul %0, %19, %cst_16 {dimension_numbers = #tpu.dot_dimension_numbers<[1], [0], [0], [1], [0, 0, 1, 1], [], []>} : vector<8x8xf32>, vector<8x32xf32>, vector<8x32xf32> -> vector<8x32xf32>
    %c0_17 = arith.constant 0 : index
    %c0_18 = arith.constant 0 : index
    %c0_19 = arith.constant 0 : index
    %21 = vector.load %arg6[%c0_17, %c0_18, %c0_19] : memref<2x1x32xf32, #tpu.memory_space<vmem>>, vector<1x1x32xf32>
    %22 = vector.shape_cast %21 : vector<1x1x32xf32> to vector<1x32xf32>
    %23 = vector.broadcast %22 : vector<1x32xf32> to vector<8x32xf32>
    %24 = arith.addf %20, %23 : vector<8x32xf32>
    %cst_20 = arith.constant 0.000000e+00 : f32
    %25 = vector.broadcast %cst_20 : f32 to vector<8x32xf32>
    %26 = arith.maximumf %24, %25 : vector<8x32xf32>
    %c1 = arith.constant 1 : index
    %c0_21 = arith.constant 0 : index
    %c0_22 = arith.constant 0 : index
    %27 = vector.load %arg5[%c1, %c0_21, %c0_22] : memref<2x32x32xf32, #tpu.memory_space<vmem>>, vector<1x32x32xf32>
    %28 = vector.shape_cast %27 : vector<1x32x32xf32> to vector<32x32xf32>
    %cst_23 = arith.constant dense<0.000000e+00> : vector<8x32xf32>
    %29 = tpu.matmul %26, %28, %cst_23 {dimension_numbers = #tpu.dot_dimension_numbers<[1], [0], [0], [1], [0, 0, 1, 1], [], []>} : vector<8x32xf32>, vector<32x32xf32>, vector<8x32xf32> -> vector<8x32xf32>
    %cst_24 = arith.constant dense<0.000000e+00> : vector<8x32xf32>
    %30 = tpu.matmul %0, %29, %cst_24 {dimension_numbers = #tpu.dot_dimension_numbers<[1], [0], [0], [1], [0, 0, 1, 1], [], []>} : vector<8x8xf32>, vector<8x32xf32>, vector<8x32xf32> -> vector<8x32xf32>
    %c1_25 = arith.constant 1 : index
    %c0_26 = arith.constant 0 : index
    %c0_27 = arith.constant 0 : index
    %31 = vector.load %arg6[%c1_25, %c0_26, %c0_27] : memref<2x1x32xf32, #tpu.memory_space<vmem>>, vector<1x1x32xf32>
    %32 = vector.shape_cast %31 : vector<1x1x32xf32> to vector<1x32xf32>
    %33 = vector.broadcast %32 : vector<1x32xf32> to vector<8x32xf32>
    %34 = arith.addf %30, %33 : vector<8x32xf32>
    %cst_28 = arith.constant 0.000000e+00 : f32
    %35 = vector.broadcast %cst_28 : f32 to vector<8x32xf32>
    %36 = arith.maximumf %34, %35 : vector<8x32xf32>
    %37 = tpu.concatenate %16, %36 in 1 : vector<8x32xf32>, vector<8x32xf32> -> vector<8x64xf32>
    %38 = tpu.concatenate %37, %6 in 1 : vector<8x64xf32>, vector<8x1xf32> -> vector<8x65xf32>
    %c0_29 = arith.constant 0 : index
    %c0_30 = arith.constant 0 : index
    %39 = vector.load %arg7[%c0_29, %c0_30] : memref<65x64xf32, #tpu.memory_space<vmem>>, vector<65x64xf32>
    %cst_31 = arith.constant dense<0.000000e+00> : vector<8x64xf32>
    %40 = tpu.matmul %38, %39, %cst_31 {dimension_numbers = #tpu.dot_dimension_numbers<[1], [0], [0], [1], [0, 0, 1, 1], [], []>} : vector<8x65xf32>, vector<65x64xf32>, vector<8x64xf32> -> vector<8x64xf32>
    %c0_32 = arith.constant 0 : index
    %c0_33 = arith.constant 0 : index
    %41 = vector.load %arg8[%c0_32, %c0_33] : memref<1x64xf32, #tpu.memory_space<vmem>>, vector<1x64xf32>
    %42 = vector.broadcast %41 : vector<1x64xf32> to vector<8x64xf32>
    %43 = arith.addf %40, %42 : vector<8x64xf32>
    %cst_34 = arith.constant 0.000000e+00 : f32
    %44 = vector.broadcast %cst_34 : f32 to vector<8x64xf32>
    %45 = arith.maximumf %43, %44 : vector<8x64xf32>
    %c0_35 = arith.constant 0 : index
    %c0_36 = arith.constant 0 : index
    %46 = vector.load %arg9[%c0_35, %c0_36] : memref<64x2xf32, #tpu.memory_space<vmem>>, vector<64x2xf32>
    %cst_37 = arith.constant dense<0.000000e+00> : vector<8x2xf32>
    %47 = tpu.matmul %45, %46, %cst_37 {dimension_numbers = #tpu.dot_dimension_numbers<[1], [0], [0], [1], [0, 0, 1, 1], [], []>} : vector<8x64xf32>, vector<64x2xf32>, vector<8x2xf32> -> vector<8x2xf32>
    %c0_38 = arith.constant 0 : index
    %c0_39 = arith.constant 0 : index
    %48 = vector.load %arg10[%c0_38, %c0_39] : memref<1x2xf32, #tpu.memory_space<vmem>>, vector<1x2xf32>
    %49 = vector.broadcast %48 : vector<1x2xf32> to vector<8x2xf32>
    %50 = arith.addf %47, %49 : vector<8x2xf32>
    %51 = vector.extract_strided_slice %50 {offsets = [0, 0], sizes = [8, 1], strides = [1, 1]} : vector<8x2xf32> to vector<8x1xf32>
    %52 = vector.extract_strided_slice %50 {offsets = [0, 1], sizes = [8, 1], strides = [1, 1]} : vector<8x2xf32> to vector<8x1xf32>
    %53 = vector.extract_strided_slice %1 {offsets = [0, 0], sizes = [8, 1], strides = [1, 1]} : vector<8x2xf32> to vector<8x1xf32>
    %cst_40 = arith.constant 0.000000e+00 : f32
    %54 = vector.broadcast %cst_40 : f32 to vector<8x1xf32>
    %55 = arith.cmpf ogt, %53, %54 : vector<8x1xf32>
    %56 = arith.select %55, %52, %51 : vector<8x1xi1>, vector<8x1xf32>
    %cst_41 = arith.constant 0.000000e+00 : f32
    %57 = vector.broadcast %cst_41 : f32 to vector<8x128xf32>
    %c0_42 = arith.constant 0 : index
    %c0_43 = arith.constant 0 : index
    %58 = vector.load %arg11[%c0_42, %c0_43] : memref<8x128xf32, #tpu.memory_space<vmem>>, vector<8x128xf32>
    tpu.vector_store %arg11[%c0_42, %c0_43], %57 {strides = array<i32>} : memref<8x128xf32, #tpu.memory_space<vmem>>, vector<8x128xf32>,
    %c0_44 = arith.constant 0 : index
    %c0_45 = arith.constant 0 : index
    %59 = vector.load %arg11[%c0_44, %c0_45] : memref<8x128xf32, #tpu.memory_space<vmem>>, vector<8x64xf32>
    tpu.vector_store %arg11[%c0_44, %c0_45], %37 {strides = array<i32>} : memref<8x128xf32, #tpu.memory_space<vmem>>, vector<8x64xf32>,
    %60 = tpu.concatenate %51, %52, %56 in 1 : vector<8x1xf32>, vector<8x1xf32>, vector<8x1xf32> -> vector<8x3xf32>
    %c0_46 = arith.constant 0 : index
    %c64 = arith.constant 64 : index
    %61 = vector.load %arg11[%c0_46, %c64] : memref<8x128xf32, #tpu.memory_space<vmem>>, vector<8x3xf32>
    tpu.vector_store %arg11[%c0_46, %c64], %60 {strides = array<i32>} : memref<8x128xf32, #tpu.memory_space<vmem>>, vector<8x3xf32>,
    return
  }
}

</mosaic_0001>

<llo_original>
// kernel: tpu_custom_call.1
$region0: #{tpu_custom_call.1}
  #allocation0 [shape = 'u32[]', space=smem, size = 0x4, offset = 0x4, fixed_abs, tag = 'smem constant byte address 0x4 - core index']
  #allocation1 [shape = 'u32[144,128]{1,0:T(1,128)}', space=vmem, size = 0x12000, scoped, tag = 'internal scratch']
  %s0 = inlined_call_operand.vmem [shape: f32[8,8], index: 0, kind: input, shape index: {}]
  %s1 = inlined_call_operand.vmem [shape: f32[8,16], index: 1, kind: input, shape index: {}]
  %s2 = inlined_call_operand.vmem [shape: f32[8,2], index: 2, kind: input, shape index: {}]
  %s3 = inlined_call_operand.vmem [shape: f32[16,32], index: 3, kind: input, shape index: {}]
  %s4 = inlined_call_operand.vmem [shape: f32[1,32], index: 4, kind: input, shape index: {}]
  %s5 = inlined_call_operand.vmem [shape: f32[2,32,32], index: 5, kind: input, shape index: {}]
  %s6 = inlined_call_operand.vmem [shape: f32[2,1,32], index: 6, kind: input, shape index: {}]
  %s7 = inlined_call_operand.vmem [shape: f32[65,64], index: 7, kind: input, shape index: {}]
  %s8 = inlined_call_operand.vmem [shape: f32[1,64], index: 8, kind: input, shape index: {}]
  %s9 = inlined_call_operand.vmem [shape: f32[64,2], index: 9, kind: input, shape index: {}]
  %s10 = inlined_call_operand.vmem [shape: f32[1,2], index: 10, kind: input, shape index: {}]
  %s11 = inlined_call_operand.hbm [shape: f32[8,128], index: 11, kind: output, shape index: {}]
  %s12 = sld [smem:[#allocation0]]
  $region54: #{tpu_custom_call.1} parent=0
    _
  %s14 = ssub.s32 1, %s12
  %s15 = scalar_select 0, %s14, %s12
  $region1: #{tpu_custom_call.1} parent=0
    #allocation2 [shape = 'u8[4096]{0}', space=vmem, size = 0x1000, scoped, tag = 'output window, operand 0, single buffered']
    #allocation3 [shape = 's32[1]{0}', space=sflag, size = 0x4, scoped, tag = 'scoped memory for tpu_custom_call.1']
    %16 = vsyncpa [#allocation3], 0
    // Predicated region
    $region2: #{tpu_custom_call.1} parent=1 // pred_check
      _
    $region3: #{tpu_custom_call.1} parent=1 // pred_check_branch
      %18 = sbr.rel (0) target = $region5
    $region4: #{tpu_custom_call.1} parent=1 // pred_region
      _
    $region5: #{tpu_custom_call.1} parent=1 // pred_fallthru
      _
    // Predicated region
    $region6: #{tpu_custom_call.1} parent=1 // pred_check
      _
    $region7: #{tpu_custom_call.1} parent=1 // pred_check_branch
      %20 = sbr.rel (0) target = $region9
    $region8: #{tpu_custom_call.1} parent=1 // pred_region
      _
    $region9: #{tpu_custom_call.1} parent=1 // pred_fallthru
      _
    // Predicated region
    $region10: #{tpu_custom_call.1} parent=1 // pred_check
      _
    $region11: #{tpu_custom_call.1} parent=1 // pred_check_branch
      %22 = sbr.rel (0) target = $region13
    $region12: #{tpu_custom_call.1} parent=1 // pred_region
      _
    $region13: #{tpu_custom_call.1} parent=1 // pred_fallthru
      _
    // Predicated region
    $region14: #{tpu_custom_call.1} parent=1 // pred_check
      _
    $region15: #{tpu_custom_call.1} parent=1 // pred_check_branch
      %24 = sbr.rel (0) target = $region17
    $region16: #{tpu_custom_call.1} parent=1 // pred_region
      _
    $region17: #{tpu_custom_call.1} parent=1 // pred_fallthru
      _
    // Predicated region
    $region18: #{tpu_custom_call.1} parent=1 // pred_check
      _
    $region19: #{tpu_custom_call.1} parent=1 // pred_check_branch
      %26 = sbr.rel (0) target = $region21
    $region20: #{tpu_custom_call.1} parent=1 // pred_region
      _
    $region21: #{tpu_custom_call.1} parent=1 // pred_fallthru
      _
    // Predicated region
    $region22: #{tpu_custom_call.1} parent=1 // pred_check
      _
    $region23: #{tpu_custom_call.1} parent=1 // pred_check_branch
      %28 = sbr.rel (0) target = $region25
    $region24: #{tpu_custom_call.1} parent=1 // pred_region
      _
    $region25: #{tpu_custom_call.1} parent=1 // pred_fallthru
      _
    // Predicated region
    $region26: #{tpu_custom_call.1} parent=1 // pred_check
      _
    $region27: #{tpu_custom_call.1} parent=1 // pred_check_branch
      %30 = sbr.rel (0) target = $region29
    $region28: #{tpu_custom_call.1} parent=1 // pred_region
      _
    $region29: #{tpu_custom_call.1} parent=1 // pred_fallthru
      _
    // Predicated region
    $region30: #{tpu_custom_call.1} parent=1 // pred_check
      _
    $region31: #{tpu_custom_call.1} parent=1 // pred_check_branch
      %32 = sbr.rel (0) target = $region33
    $region32: #{tpu_custom_call.1} parent=1 // pred_region
      _
    $region33: #{tpu_custom_call.1} parent=1 // pred_fallthru
      _
    // Predicated region
    $region34: #{tpu_custom_call.1} parent=1 // pred_check
      _
    $region35: #{tpu_custom_call.1} parent=1 // pred_check_branch
      %34 = sbr.rel (0) target = $region37
    $region36: #{tpu_custom_call.1} parent=1 // pred_region
      _
    $region37: #{tpu_custom_call.1} parent=1 // pred_fallthru
      _
    // Predicated region
    $region38: #{tpu_custom_call.1} parent=1 // pred_check
      _
    $region39: #{tpu_custom_call.1} parent=1 // pred_check_branch
      %36 = sbr.rel (0) target = $region41
    $region40: #{tpu_custom_call.1} parent=1 // pred_region
      _
    $region41: #{tpu_custom_call.1} parent=1 // pred_fallthru
      _
    // Predicated region
    $region42: #{tpu_custom_call.1} parent=1 // pred_check
      _
    $region43: #{tpu_custom_call.1} parent=1 // pred_check_branch
      %38 = sbr.rel (0) target = $region45
    $region44: #{tpu_custom_call.1} parent=1 // pred_region
      _
    $region45: #{tpu_custom_call.1} parent=1 // pred_fallthru
      _
    %v39 = vld [vmem:[%s0] sm:$0xff]
    %v40 = vld [vmem:[%s2] sm:$0xff]
    %vm41 = vcmask 64512
    %v43 = vsel %vm41, %v39, 0
    %45 = vmatprep.subr.mxu0 0.0
    %46 = vmatpush1.msra.mxu0 %v40
    %47 = vmatprep.subr.mxu0 0.0
    %48 = vmatpush1.msra.mxu0 0.0
    %49 = vmatprep.subr.mxu0 0.0
    %50 = vmatpush1.msra.mxu0 0.0
    %51 = vmatprep.subr.mxu0 0.0
    %52 = vmatpush1.msra.mxu0 0.0
    %53 = vmatprep.subr.mxu0 0.0
    %54 = vmatpush1.msra.mxu0 0.0
    %55 = vmatprep.subr.mxu0 0.0
    %56 = vmatpush1.msra.mxu0 0.0
    %57 = vmatprep.subr.mxu0 0.0
    %58 = vmatpush1.msra.mxu0 0.0
    %59 = vmatprep.subr.mxu0 0.0
    %60 = vmatpush1.msra.mxu0 0.0
    %61 = vmatprep.subr.mxu0 0.0
    %62 = vmatpush1.msra.mxu0 0.0
    %63 = vmatprep.subr.mxu0 0.0
    %64 = vmatpush1.msra.mxu0 0.0
    %65 = vmatprep.subr.mxu0 0.0
    %66 = vmatpush1.msra.mxu0 0.0
    %67 = vmatprep.subr.mxu0 0.0
    %68 = vmatpush1.msra.mxu0 0.0
    %69 = vmatprep.subr.mxu0 0.0
    %70 = vmatpush1.msra.mxu0 0.0
    %71 = vmatprep.subr.mxu0 0.0
    %72 = vmatpush1.msra.mxu0 0.0
    %73 = vmatprep.subr.mxu0 0.0
    %74 = vmatpush1.msra.mxu0 0.0
    %75 = vmatprep.subr.mxu0 0.0
    %76 = vmatpush1.msra.mxu0 0.0
    %77 = vmatprep.subr.mxu0 0.0
    %78 = vmatpush1.msra.mxu0 0.0
    %79 = vmatprep.subr.mxu0 0.0
    %80 = vmatpush1.msra.mxu0 0.0
    %81 = vmatprep.subr.mxu0 0.0
    %82 = vmatpush1.msra.mxu0 0.0
    %83 = vmatprep.subr.mxu0 0.0
    %84 = vmatpush1.msra.mxu0 0.0
    %85 = vmatprep.subr.mxu0 0.0
    %86 = vmatpush1.msra.mxu0 0.0
    %87 = vmatprep.subr.mxu0 0.0
    %88 = vmatpush1.msra.mxu0 0.0
    %89 = vmatprep.subr.mxu0 0.0
    %90 = vmatpush1.msra.mxu0 0.0
    %91 = vmatprep.subr.mxu0 0.0
    %92 = vmatpush1.msra.mxu0 0.0
    %93 = vmatprep.subr.mxu0 0.0
    %94 = vmatpush1.msra.mxu0 0.0
    %95 = vmatprep.subr.mxu0 0.0
    %96 = vmatpush1.msra.mxu0 0.0
    %97 = vmatprep.subr.mxu0 0.0
    %98 = vmatpush1.msra.mxu0 0.0
    %99 = vmatprep.subr.mxu0 0.0
    %100 = vmatpush1.msra.mxu0 0.0
    %101 = vmatprep.subr.mxu0 0.0
    %102 = vmatpush1.msra.mxu0 0.0
    %103 = vmatprep.subr.mxu0 0.0
    %104 = vmatpush1.msra.mxu0 0.0
    %105 = vmatprep.subr.mxu0 0.0
    %106 = vmatpush1.msra.mxu0 0.0
    %107 = vmatprep.subr.mxu0 0.0
    %108 = vmatpush1.msra.mxu0 0.0
    %109 = vmatprep.mubr.f32.mxu0 0.0
    %110 = vmatmul.mubr.f32.gmra.mrb[0].mxu0 %v43
    %v111 = vpop.f32.mrb[0].mxu0
    %v112 = vadd.f32 0.0, %v111
    %v113 = vpop.f32.mrb[0].mxu0
    %114 = vdwg.mxu0
    %v115 = vrcp.pop %v112
    %117 = vrot.lane.b32.xlu0 %v115, 127
    %v118 = vpop.permute.xlu0 %117
    %v120 = vmul.f32 %v112, %v118
    %v121 = vld [vmem:[%s1] sm:$0xff]
    %v122 = vld [vmem:[%s3] sm:$0xff]
    %v123 = vld [vmem:[%s3 + $0x8] sm:$0xff]
    %vm124 = vcmask 130048
    %v126 = vsel %vm124, %v121, 0
    %128 = vmatprep.subr.mxu0 0.0
    %129 = vmatpush1.msra.mxu0 %v122
    %130 = vmatprep.subr.mxu0 0.0
    %131 = vmatpush1.msra.mxu0 %v123
    %132 = vmatprep.subr.mxu0 0.0
    %133 = vmatpush1.msra.mxu0 0.0
    %134 = vmatprep.subr.mxu0 0.0
    %135 = vmatpush1.msra.mxu0 0.0
    %136 = vmatprep.subr.mxu0 0.0
    %137 = vmatpush1.msra.mxu0 0.0
    %138 = vmatprep.subr.mxu0 0.0
    %139 = vmatpush1.msra.mxu0 0.0
    %140 = vmatprep.subr.mxu0 0.0
    %141 = vmatpush1.msra.mxu0 0.0
    %142 = vmatprep.subr.mxu0 0.0
    %143 = vmatpush1.msra.mxu0 0.0
    %144 = vmatprep.subr.mxu0 0.0
    %145 = vmatpush1.msra.mxu0 0.0
    %146 = vmatprep.subr.mxu0 0.0
    %147 = vmatpush1.msra.mxu0 0.0
    %148 = vmatprep.subr.mxu0 0.0
    %149 = vmatpush1.msra.mxu0 0.0
    %150 = vmatprep.subr.mxu0 0.0
    %151 = vmatpush1.msra.mxu0 0.0
    %152 = vmatprep.subr.mxu0 0.0
    %153 = vmatpush1.msra.mxu0 0.0
    %154 = vmatprep.subr.mxu0 0.0
    %155 = vmatpush1.msra.mxu0 0.0
    %156 = vmatprep.subr.mxu0 0.0
    %157 = vmatpush1.msra.mxu0 0.0
    %158 = vmatprep.subr.mxu0 0.0
    %159 = vmatpush1.msra.mxu0 0.0
    %160 = vmatprep.subr.mxu0 0.0
    %161 = vmatpush1.msra.mxu0 0.0
    %162 = vmatprep.subr.mxu0 0.0
    %163 = vmatpush1.msra.mxu0 0.0
    %164 = vmatprep.subr.mxu0 0.0
    %165 = vmatpush1.msra.mxu0 0.0
    %166 = vmatprep.subr.mxu0 0.0
    %167 = vmatpush1.msra.mxu0 0.0
    %168 = vmatprep.subr.mxu0 0.0
    %169 = vmatpush1.msra.mxu0 0.0
    %170 = vmatprep.subr.mxu0 0.0
    %171 = vmatpush1.msra.mxu0 0.0
    %172 = vmatprep.subr.mxu0 0.0
    %173 = vmatpush1.msra.mxu0 0.0
    %174 = vmatprep.subr.mxu0 0.0
    %175 = vmatpush1.msra.mxu0 0.0
    %176 = vmatprep.subr.mxu0 0.0
    %177 = vmatpush1.msra.mxu0 0.0
    %178 = vmatprep.subr.mxu0 0.0
    %179 = vmatpush1.msra.mxu0 0.0
    %180 = vmatprep.subr.mxu0 0.0
    %181 = vmatpush1.msra.mxu0 0.0
    %182 = vmatprep.subr.mxu0 0.0
    %183 = vmatpush1.msra.mxu0 0.0
    %184 = vmatprep.subr.mxu0 0.0
    %185 = vmatpush1.msra.mxu0 0.0
    %186 = vmatprep.subr.mxu0 0.0
    %187 = vmatpush1.msra.mxu0 0.0
    %188 = vmatprep.subr.mxu0 0.0
    %189 = vmatpush1.msra.mxu0 0.0
    %190 = vmatprep.subr.mxu0 0.0
    %191 = vmatpush1.msra.mxu0 0.0
    %192 = vmatprep.mubr.f32.mxu0 0.0
    %193 = vmatmul.mubr.f32.gmra.mrb[0].mxu0 %v126
    %v194 = vpop.f32.mrb[0].mxu0
    %v195 = vadd.f32 0.0, %v194
    %v196 = vpop.f32.mrb[0].mxu0
    %197 = vdwg.mxu0
    %198 = vmatprep.subr.mxu0 0.0
    %199 = vmatpush1.msra.mxu0 %v195
    %200 = vmatprep.subr.mxu0 0.0
    %201 = vmatpush1.msra.mxu0 0.0
    %202 = vmatprep.subr.mxu0 0.0
    %203 = vmatpush1.msra.mxu0 0.0
    %204 = vmatprep.subr.mxu0 0.0
    %205 = vmatpush1.msra.mxu0 0.0
    %206 = vmatprep.subr.mxu0 0.0
    %207 = vmatpush1.msra.mxu0 0.0
    %208 = vmatprep.subr.mxu0 0.0
    %209 = vmatpush1.msra.mxu0 0.0
    %210 = vmatprep.subr.mxu0 0.0
    %211 = vmatpush1.msra.mxu0 0.0
    %212 = vmatprep.subr.mxu0 0.0
    %213 = vmatpush1.msra.mxu0 0.0
    %214 = vmatprep.subr.mxu0 0.0
    %215 = vmatpush1.msra.mxu0 0.0
    %216 = vmatprep.subr.mxu0 0.0
    %217 = vmatpush1.msra.mxu0 0.0
    %218 = vmatprep.subr.mxu0 0.0
    %219 = vmatpush1.msra.mxu0 0.0
    %220 = vmatprep.subr.mxu0 0.0
    %221 = vmatpush1.msra.mxu0 0.0
    %222 = vmatprep.subr.mxu0 0.0
    %223 = vmatpush1.msra.mxu0 0.0
    %224 = vmatprep.subr.mxu0 0.0
    %225 = vmatpush1.msra.mxu0 0.0
    %226 = vmatprep.subr.mxu0 0.0
    %227 = vmatpush1.msra.mxu0 0.0
    %228 = vmatprep.subr.mxu0 0.0
    %229 = vmatpush1.msra.mxu0 0.0
    %230 = vmatprep.subr.mxu0 0.0
    %231 = vmatpush1.msra.mxu0 0.0
    %232 = vmatprep.subr.mxu0 0.0
    %233 = vmatpush1.msra.mxu0 0.0
    %234 = vmatprep.subr.mxu0 0.0
    %235 = vmatpush1.msra.mxu0 0.0
    %236 = vmatprep.subr.mxu0 0.0
    %237 = vmatpush1.msra.mxu0 0.0
    %238 = vmatprep.subr.mxu0 0.0
    %239 = vmatpush1.msra.mxu0 0.0
    %240 = vmatprep.subr.mxu0 0.0
    %241 = vmatpush1.msra.mxu0 0.0
    %242 = vmatprep.subr.mxu0 0.0
    %243 = vmatpush1.msra.mxu0 0.0
    %244 = vmatprep.subr.mxu0 0.0
    %245 = vmatpush1.msra.mxu0 0.0
    %246 = vmatprep.subr.mxu0 0.0
    %247 = vmatpush1.msra.mxu0 0.0
    %248 = vmatprep.subr.mxu0 0.0
    %249 = vmatpush1.msra.mxu0 0.0
    %250 = vmatprep.subr.mxu0 0.0
    %251 = vmatpush1.msra.mxu0 0.0
    %252 = vmatprep.subr.mxu0 0.0
    %253 = vmatpush1.msra.mxu0 0.0
    %254 = vmatprep.subr.mxu0 0.0
    %255 = vmatpush1.msra.mxu0 0.0
    %256 = vmatprep.subr.mxu0 0.0
    %257 = vmatpush1.msra.mxu0 0.0
    %258 = vmatprep.subr.mxu0 0.0
    %259 = vmatpush1.msra.mxu0 0.0
    %260 = vmatprep.subr.mxu0 0.0
    %261 = vmatpush1.msra.mxu0 0.0
    %262 = vmatprep.mubr.f32.mxu0 0.0
    %263 = vmatmul.mubr.f32.gmra.mrb[0].mxu0 %v43
    %v264 = vpop.f32.mrb[0].mxu0
    %v265 = vadd.f32 %v195, %v264
    %v266 = vpop.f32.mrb[0].mxu0
    %267 = vdwg.mxu0
    %v268 = vld [vmem:[%s4] sm:$0x1]
    %v270 = vlaneseq
    %v271 = vshrl.u32 %v270, 7
    %v272 = vsub.s32 0, %v271
    %v273 = vrot.slane %v268, %v272
    %v275 = vadd.f32 %v265, %v273
    %v276 = vmax.f32 %v275, 0.0
    %v277 = vld [vmem:[%s5] sm:$0xff]
    %v278 = vld [vmem:[%s5 + $0x8] sm:$0xff]
    %v279 = vld [vmem:[%s5 + $0x10] sm:$0xff]
    %v280 = vld [vmem:[%s5 + $0x18] sm:$0xff]
    %vm281 = vcmask 261120
    %v283 = vsel %vm281, %v276, 0
    %285 = vmatprep.subr.mxu0 0.0
    %286 = vmatpush1.msra.mxu0 %v277
    %287 = vmatprep.subr.mxu0 0.0
    %288 = vmatpush1.msra.mxu0 %v278
    %289 = vmatprep.subr.mxu0 0.0
    %290 = vmatpush1.msra.mxu0 %v279
    %291 = vmatprep.subr.mxu0 0.0
    %292 = vmatpush1.msra.mxu0 %v280
    %293 = vmatprep.subr.mxu0 0.0
    %294 = vmatpush1.msra.mxu0 0.0
    %295 = vmatprep.subr.mxu0 0.0
    %296 = vmatpush1.msra.mxu0 0.0
    %297 = vmatprep.subr.mxu0 0.0
    %298 = vmatpush1.msra.mxu0 0.0
    %299 = vmatprep.subr.mxu0 0.0
    %300 = vmatpush1.msra.mxu0 0.0
    %301 = vmatprep.subr.mxu0 0.0
    %302 = vmatpush1.msra.mxu0 0.0
    %303 = vmatprep.subr.mxu0 0.0
    %304 = vmatpush1.msra.mxu0 0.0
    %305 = vmatprep.subr.mxu0 0.0
    %306 = vmatpush1.msra.mxu0 0.0
    %307 = vmatprep.subr.mxu0 0.0
    %308 = vmatpush1.msra.mxu0 0.0
    %309 = vmatprep.subr.mxu0 0.0
    %310 = vmatpush1.msra.mxu0 0.0
    %311 = vmatprep.subr.mxu0 0.0
    %312 = vmatpush1.msra.mxu0 0.0
    %313 = vmatprep.subr.mxu0 0.0
    %314 = vmatpush1.msra.mxu0 0.0
    %315 = vmatprep.subr.mxu0 0.0
    %316 = vmatpush1.msra.mxu0 0.0
    %317 = vmatprep.subr.mxu0 0.0
    %318 = vmatpush1.msra.mxu0 0.0
    %319 = vmatprep.subr.mxu0 0.0
    %320 = vmatpush1.msra.mxu0 0.0
    %321 = vmatprep.subr.mxu0 0.0
    %322 = vmatpush1.msra.mxu0 0.0
    %323 = vmatprep.subr.mxu0 0.0
    %324 = vmatpush1.msra.mxu0 0.0
    %325 = vmatprep.subr.mxu0 0.0
    %326 = vmatpush1.msra.mxu0 0.0
    %327 = vmatprep.subr.mxu0 0.0
    %328 = vmatpush1.msra.mxu0 0.0
    %329 = vmatprep.subr.mxu0 0.0
    %330 = vmatpush1.msra.mxu0 0.0
    %331 = vmatprep.subr.mxu0 0.0
    %332 = vmatpush1.msra.mxu0 0.0
    %333 = vmatprep.subr.mxu0 0.0
    %334 = vmatpush1.msra.mxu0 0.0
    %335 = vmatprep.subr.mxu0 0.0
    %336 = vmatpush1.msra.mxu0 0.0
    %337 = vmatprep.subr.mxu0 0.0
    %338 = vmatpush1.msra.mxu0 0.0
    %339 = vmatprep.subr.mxu0 0.0
    %340 = vmatpush1.msra.mxu0 0.0
    %341 = vmatprep.subr.mxu0 0.0
    %342 = vmatpush1.msra.mxu0 0.0
    %343 = vmatprep.subr.mxu0 0.0
    %344 = vmatpush1.msra.mxu0 0.0
    %345 = vmatprep.subr.mxu0 0.0
    %346 = vmatpush1.msra.mxu0 0.0
    %347 = vmatprep.subr.mxu0 0.0
    %348 = vmatpush1.msra.mxu0 0.0
    %349 = vmatprep.mubr.f32.mxu0 0.0
    %350 = vmatmul.mubr.f32.gmra.mrb[0].mxu0 %v283
    %v351 = vpop.f32.mrb[0].mxu0
    %v352 = vadd.f32 0.0, %v351
    %v353 = vpop.f32.mrb[0].mxu0
    %354 = vdwg.mxu0
    %v355 = vld [vmem:[%s6] sm:$0x1]
    %v357 = vlaneseq
    %v358 = vshrl.u32 %v357, 7
    %v359 = vsub.s32 0, %v358
    %v360 = vrot.slane %v355, %v359
    %362 = vmatprep.subr.mxu0 0.0
    %363 = vmatpush1.msra.mxu0 %v352
    %364 = vmatprep.subr.mxu0 0.0
    %365 = vmatpush1.msra.mxu0 0.0
    %366 = vmatprep.subr.mxu0 0.0
    %367 = vmatpush1.msra.mxu0 0.0
    %368 = vmatprep.subr.mxu0 0.0
    %369 = vmatpush1.msra.mxu0 0.0
    %370 = vmatprep.subr.mxu0 0.0
    %371 = vmatpush1.msra.mxu0 0.0
    %372 = vmatprep.subr.mxu0 0.0
    %373 = vmatpush1.msra.mxu0 0.0
    %374 = vmatprep.subr.mxu0 0.0
    %375 = vmatpush1.msra.mxu0 0.0
    %376 = vmatprep.subr.mxu0 0.0
    %377 = vmatpush1.msra.mxu0 0.0
    %378 = vmatprep.subr.mxu0 0.0
    %379 = vmatpush1.msra.mxu0 0.0
    %380 = vmatprep.subr.mxu0 0.0
    %381 = vmatpush1.msra.mxu0 0.0
    %382 = vmatprep.subr.mxu0 0.0
    %383 = vmatpush1.msra.mxu0 0.0
    %384 = vmatprep.subr.mxu0 0.0
    %385 = vmatpush1.msra.mxu0 0.0
    %386 = vmatprep.subr.mxu0 0.0
    %387 = vmatpush1.msra.mxu0 0.0
    %388 = vmatprep.subr.mxu0 0.0
    %389 = vmatpush1.msra.mxu0 0.0
    %390 = vmatprep.subr.mxu0 0.0
    %391 = vmatpush1.msra.mxu0 0.0
    %392 = vmatprep.subr.mxu0 0.0
    %393 = vmatpush1.msra.mxu0 0.0
    %394 = vmatprep.subr.mxu0 0.0
    %395 = vmatpush1.msra.mxu0 0.0
    %396 = vmatprep.subr.mxu0 0.0
    %397 = vmatpush1.msra.mxu0 0.0
    %398 = vmatprep.subr.mxu0 0.0
    %399 = vmatpush1.msra.mxu0 0.0
    %400 = vmatprep.subr.mxu0 0.0
    %401 = vmatpush1.msra.mxu0 0.0
    %402 = vmatprep.subr.mxu0 0.0
    %403 = vmatpush1.msra.mxu0 0.0
    %404 = vmatprep.subr.mxu0 0.0
    %405 = vmatpush1.msra.mxu0 0.0
    %406 = vmatprep.subr.mxu0 0.0
    %407 = vmatpush1.msra.mxu0 0.0
    %408 = vmatprep.subr.mxu0 0.0
    %409 = vmatpush1.msra.mxu0 0.0
    %410 = vmatprep.subr.mxu0 0.0
    %411 = vmatpush1.msra.mxu0 0.0
    %412 = vmatprep.subr.mxu0 0.0
    %413 = vmatpush1.msra.mxu0 0.0
    %414 = vmatprep.subr.mxu0 0.0
    %415 = vmatpush1.msra.mxu0 0.0
    %416 = vmatprep.subr.mxu0 0.0
    %417 = vmatpush1.msra.mxu0 0.0
    %418 = vmatprep.subr.mxu0 0.0
    %419 = vmatpush1.msra.mxu0 0.0
    %420 = vmatprep.subr.mxu0 0.0
    %421 = vmatpush1.msra.mxu0 0.0
    %422 = vmatprep.subr.mxu0 0.0
    %423 = vmatpush1.msra.mxu0 0.0
    %424 = vmatprep.subr.mxu0 0.0
    %425 = vmatpush1.msra.mxu0 0.0
    %426 = vmatprep.mubr.f32.mxu0 0.0
    %427 = vmatmul.mubr.f32.gmra.mrb[0].mxu0 %v43
    %v428 = vpop.f32.mrb[0].mxu0
    %v429 = vadd.f32 %v360, %v428
    %v430 = vpop.f32.mrb[0].mxu0
    %431 = vdwg.mxu0
    %v432 = vmax.f32 %v429, 0.0
    %s433 = scalar_lea.vmem %s5, 32
    %v434 = vld [vmem:[%s433] sm:$0xff]
    %v435 = vld [vmem:[%s433 + $0x8] sm:$0xff]
    %v436 = vld [vmem:[%s433 + $0x10] sm:$0xff]
    %v437 = vld [vmem:[%s433 + $0x18] sm:$0xff]
    %v439 = vsel %vm281, %v432, 0
    %441 = vmatprep.subr.mxu0 0.0
    %442 = vmatpush1.msra.mxu0 %v434
    %443 = vmatprep.subr.mxu0 0.0
    %444 = vmatpush1.msra.mxu0 %v435
    %445 = vmatprep.subr.mxu0 0.0
    %446 = vmatpush1.msra.mxu0 %v436
    %447 = vmatprep.subr.mxu0 0.0
    %448 = vmatpush1.msra.mxu0 %v437
    %449 = vmatprep.subr.mxu0 0.0
    %450 = vmatpush1.msra.mxu0 0.0
    %451 = vmatprep.subr.mxu0 0.0
    %452 = vmatpush1.msra.mxu0 0.0
    %453 = vmatprep.subr.mxu0 0.0
    %454 = vmatpush1.msra.mxu0 0.0
    %455 = vmatprep.subr.mxu0 0.0
    %456 = vmatpush1.msra.mxu0 0.0
    %457 = vmatprep.subr.mxu0 0.0
    %458 = vmatpush1.msra.mxu0 0.0
    %459 = vmatprep.subr.mxu0 0.0
    %460 = vmatpush1.msra.mxu0 0.0
    %461 = vmatprep.subr.mxu0 0.0
    %462 = vmatpush1.msra.mxu0 0.0
    %463 = vmatprep.subr.mxu0 0.0
    %464 = vmatpush1.msra.mxu0 0.0
    %465 = vmatprep.subr.mxu0 0.0
    %466 = vmatpush1.msra.mxu0 0.0
    %467 = vmatprep.subr.mxu0 0.0
    %468 = vmatpush1.msra.mxu0 0.0
    %469 = vmatprep.subr.mxu0 0.0
    %470 = vmatpush1.msra.mxu0 0.0
    %471 = vmatprep.subr.mxu0 0.0
    %472 = vmatpush1.msra.mxu0 0.0
    %473 = vmatprep.subr.mxu0 0.0
    %474 = vmatpush1.msra.mxu0 0.0
    %475 = vmatprep.subr.mxu0 0.0
    %476 = vmatpush1.msra.mxu0 0.0
    %477 = vmatprep.subr.mxu0 0.0
    %478 = vmatpush1.msra.mxu0 0.0
    %479 = vmatprep.subr.mxu0 0.0
    %480 = vmatpush1.msra.mxu0 0.0
    %481 = vmatprep.subr.mxu0 0.0
    %482 = vmatpush1.msra.mxu0 0.0
    %483 = vmatprep.subr.mxu0 0.0
    %484 = vmatpush1.msra.mxu0 0.0
    %485 = vmatprep.subr.mxu0 0.0
    %486 = vmatpush1.msra.mxu0 0.0
    %487 = vmatprep.subr.mxu0 0.0
    %488 = vmatpush1.msra.mxu0 0.0
    %489 = vmatprep.subr.mxu0 0.0
    %490 = vmatpush1.msra.mxu0 0.0
    %491 = vmatprep.subr.mxu0 0.0
    %492 = vmatpush1.msra.mxu0 0.0
    %493 = vmatprep.subr.mxu0 0.0
    %494 = vmatpush1.msra.mxu0 0.0
    %495 = vmatprep.subr.mxu0 0.0
    %496 = vmatpush1.msra.mxu0 0.0
    %497 = vmatprep.subr.mxu0 0.0
    %498 = vmatpush1.msra.mxu0 0.0
    %499 = vmatprep.subr.mxu0 0.0
    %500 = vmatpush1.msra.mxu0 0.0
    %501 = vmatprep.subr.mxu0 0.0
    %502 = vmatpush1.msra.mxu0 0.0
    %503 = vmatprep.subr.mxu0 0.0
    %504 = vmatpush1.msra.mxu0 0.0
    %505 = vmatprep.mubr.f32.mxu0 0.0
    %506 = vmatmul.mubr.f32.gmra.mrb[0].mxu0 %v439
    %v507 = vpop.f32.mrb[0].mxu0
    %v508 = vadd.f32 0.0, %v507
    %v509 = vpop.f32.mrb[0].mxu0
    %510 = vdwg.mxu0
    %s511 = scalar_lea.vmem %s6, 1
    %v512 = vld [vmem:[%s511] sm:$0x1]
    %v514 = vlaneseq
    %v515 = vshrl.u32 %v514, 7
    %v516 = vsub.s32 0, %v515
    %v517 = vrot.slane %v512, %v516
    %519 = vmatprep.subr.mxu0 0.0
    %520 = vmatpush1.msra.mxu0 %v508
    %521 = vmatprep.subr.mxu0 0.0
    %522 = vmatpush1.msra.mxu0 0.0
    %523 = vmatprep.subr.mxu0 0.0
    %524 = vmatpush1.msra.mxu0 0.0
    %525 = vmatprep.subr.mxu0 0.0
    %526 = vmatpush1.msra.mxu0 0.0
    %527 = vmatprep.subr.mxu0 0.0
    %528 = vmatpush1.msra.mxu0 0.0
    %529 = vmatprep.subr.mxu0 0.0
    %530 = vmatpush1.msra.mxu0 0.0
    %531 = vmatprep.subr.mxu0 0.0
    %532 = vmatpush1.msra.mxu0 0.0
    %533 = vmatprep.subr.mxu0 0.0
    %534 = vmatpush1.msra.mxu0 0.0
    %535 = vmatprep.subr.mxu0 0.0
    %536 = vmatpush1.msra.mxu0 0.0
    %537 = vmatprep.subr.mxu0 0.0
    %538 = vmatpush1.msra.mxu0 0.0
    %539 = vmatprep.subr.mxu0 0.0
    %540 = vmatpush1.msra.mxu0 0.0
    %541 = vmatprep.subr.mxu0 0.0
    %542 = vmatpush1.msra.mxu0 0.0
    %543 = vmatprep.subr.mxu0 0.0
    %544 = vmatpush1.msra.mxu0 0.0
    %545 = vmatprep.subr.mxu0 0.0
    %546 = vmatpush1.msra.mxu0 0.0
    %547 = vmatprep.subr.mxu0 0.0
    %548 = vmatpush1.msra.mxu0 0.0
    %549 = vmatprep.subr.mxu0 0.0
    %550 = vmatpush1.msra.mxu0 0.0
    %551 = vmatprep.subr.mxu0 0.0
    %552 = vmatpush1.msra.mxu0 0.0
    %553 = vmatprep.subr.mxu0 0.0
    %554 = vmatpush1.msra.mxu0 0.0
    %555 = vmatprep.subr.mxu0 0.0
    %556 = vmatpush1.msra.mxu0 0.0
    %557 = vmatprep.subr.mxu0 0.0
    %558 = vmatpush1.msra.mxu0 0.0
    %559 = vmatprep.subr.mxu0 0.0
    %560 = vmatpush1.msra.mxu0 0.0
    %561 = vmatprep.subr.mxu0 0.0
    %562 = vmatpush1.msra.mxu0 0.0
    %563 = vmatprep.subr.mxu0 0.0
    %564 = vmatpush1.msra.mxu0 0.0
    %565 = vmatprep.subr.mxu0 0.0
    %566 = vmatpush1.msra.mxu0 0.0
    %567 = vmatprep.subr.mxu0 0.0
    %568 = vmatpush1.msra.mxu0 0.0
    %569 = vmatprep.subr.mxu0 0.0
    %570 = vmatpush1.msra.mxu0 0.0
    %571 = vmatprep.subr.mxu0 0.0
    %572 = vmatpush1.msra.mxu0 0.0
    %573 = vmatprep.subr.mxu0 0.0
    %574 = vmatpush1.msra.mxu0 0.0
    %575 = vmatprep.subr.mxu0 0.0
    %576 = vmatpush1.msra.mxu0 0.0
    %577 = vmatprep.subr.mxu0 0.0
    %578 = vmatpush1.msra.mxu0 0.0
    %579 = vmatprep.subr.mxu0 0.0
    %580 = vmatpush1.msra.mxu0 0.0
    %581 = vmatprep.subr.mxu0 0.0
    %582 = vmatpush1.msra.mxu0 0.0
    %583 = vmatprep.mubr.f32.mxu0 0.0
    %584 = vmatmul.mubr.f32.gmra.mrb[0].mxu0 %v43
    %v585 = vpop.f32.mrb[0].mxu0
    %v586 = vadd.f32 %v517, %v585
    %v587 = vpop.f32.mrb[0].mxu0
    %588 = vdwg.mxu0
    %v589 = vmax.f32 %v586, 0.0
    %591 = vrot.lane.b32.xlu0 %v589, 32
    %v592 = vpop.permute.xlu0 %591
    %v594 = vsel %vm281, %v276, %v592
    %596 = vrot.lane.b32.xlu0 %v120, 64
    %v597 = vpop.permute.xlu0 %596
    %vm599 = vcmask 523264
    %v600 = vsel %vm599, %v594, %v597
    %v601 = vld [vmem:[%s7] sm:$0xff]
    %v602 = vld [vmem:[%s7 + $0x8] sm:$0xff]
    %v603 = vld [vmem:[%s7 + $0x10] sm:$0xff]
    %v604 = vld [vmem:[%s7 + $0x18] sm:$0xff]
    %v605 = vld [vmem:[%s7 + $0x20] sm:$0xff]
    %v606 = vld [vmem:[%s7 + $0x28] sm:$0xff]
    %v607 = vld [vmem:[%s7 + $0x30] sm:$0xff]
    %v608 = vld [vmem:[%s7 + $0x38] sm:$0xff]
    %v609 = vld [vmem:[%s7 + $0x40] sm:$0x1]
    %v610 = vld [vmem:[%s8] sm:$0x1]
    %v612 = vlaneseq
    %v613 = vshrl.u32 %v612, 7
    %v614 = vsub.s32 0, %v613
    %v615 = vrot.slane %v610, %v614
    %vm617 = vcmask 531456
    %v619 = vsel %vm617, %v600, 0
    %vm621 = vcmask 1040384
    %v623 = vsel %vm621, %v609, 0
    %625 = vmatprep.subr.mxu0 0.0
    %626 = vmatpush1.msra.mxu0 %v601
    %627 = vmatprep.subr.mxu0 0.0
    %628 = vmatpush1.msra.mxu0 %v602
    %629 = vmatprep.subr.mxu0 0.0
    %630 = vmatpush1.msra.mxu0 %v603
    %631 = vmatprep.subr.mxu0 0.0
    %632 = vmatpush1.msra.mxu0 %v604
    %633 = vmatprep.subr.mxu0 0.0
    %634 = vmatpush1.msra.mxu0 %v605
    %635 = vmatprep.subr.mxu0 0.0
    %636 = vmatpush1.msra.mxu0 %v606
    %637 = vmatprep.subr.mxu0 0.0
    %638 = vmatpush1.msra.mxu0 %v607
    %639 = vmatprep.subr.mxu0 0.0
    %640 = vmatpush1.msra.mxu0 %v608
    %641 = vmatprep.subr.mxu0 0.0
    %642 = vmatpush1.msra.mxu0 %v623
    %643 = vmatprep.subr.mxu0 0.0
    %644 = vmatpush1.msra.mxu0 0.0
    %645 = vmatprep.subr.mxu0 0.0
    %646 = vmatpush1.msra.mxu0 0.0
    %647 = vmatprep.subr.mxu0 0.0
    %648 = vmatpush1.msra.mxu0 0.0
    %649 = vmatprep.subr.mxu0 0.0
    %650 = vmatpush1.msra.mxu0 0.0
    %651 = vmatprep.subr.mxu0 0.0
    %652 = vmatpush1.msra.mxu0 0.0
    %653 = vmatprep.subr.mxu0 0.0
    %654 = vmatpush1.msra.mxu0 0.0
    %655 = vmatprep.subr.mxu0 0.0
    %656 = vmatpush1.msra.mxu0 0.0
    %657 = vmatprep.subr.mxu0 0.0
    %658 = vmatpush1.msra.mxu0 0.0
    %659 = vmatprep.subr.mxu0 0.0
    %660 = vmatpush1.msra.mxu0 0.0
    %661 = vmatprep.subr.mxu0 0.0
    %662 = vmatpush1.msra.mxu0 0.0
    %663 = vmatprep.subr.mxu0 0.0
    %664 = vmatpush1.msra.mxu0 0.0
    %665 = vmatprep.subr.mxu0 0.0
    %666 = vmatpush1.msra.mxu0 0.0
    %667 = vmatprep.subr.mxu0 0.0
    %668 = vmatpush1.msra.mxu0 0.0
    %669 = vmatprep.subr.mxu0 0.0
    %670 = vmatpush1.msra.mxu0 0.0
    %671 = vmatprep.subr.mxu0 0.0
    %672 = vmatpush1.msra.mxu0 0.0
    %673 = vmatprep.subr.mxu0 0.0
    %674 = vmatpush1.msra.mxu0 0.0
    %675 = vmatprep.subr.mxu0 0.0
    %676 = vmatpush1.msra.mxu0 0.0
    %677 = vmatprep.subr.mxu0 0.0
    %678 = vmatpush1.msra.mxu0 0.0
    %679 = vmatprep.subr.mxu0 0.0
    %680 = vmatpush1.msra.mxu0 0.0
    %681 = vmatprep.subr.mxu0 0.0
    %682 = vmatpush1.msra.mxu0 0.0
    %683 = vmatprep.subr.mxu0 0.0
    %684 = vmatpush1.msra.mxu0 0.0
    %685 = vmatprep.subr.mxu0 0.0
    %686 = vmatpush1.msra.mxu0 0.0
    %687 = vmatprep.subr.mxu0 0.0
    %688 = vmatpush1.msra.mxu0 0.0
    %689 = vmatprep.mubr.f32.mxu0 0.0
    %690 = vmatmul.mubr.f32.gmra.mrb[0].mxu0 %v619
    %v691 = vpop.f32.mrb[0].mxu0
    %v692 = vadd.f32 %v615, %v691
    %v693 = vpop.f32.mrb[0].mxu0
    %694 = vdwg.mxu0
    %v695 = vmax.f32 %v692, 0.0
    %v696 = vld [vmem:[%s9] sm:$0xff]
    %v697 = vld [vmem:[%s9 + $0x8] sm:$0xff]
    %v698 = vld [vmem:[%s9 + $0x10] sm:$0xff]
    %v699 = vld [vmem:[%s9 + $0x18] sm:$0xff]
    %v700 = vld [vmem:[%s9 + $0x20] sm:$0xff]
    %v701 = vld [vmem:[%s9 + $0x28] sm:$0xff]
    %v702 = vld [vmem:[%s9 + $0x30] sm:$0xff]
    %v703 = vld [vmem:[%s9 + $0x38] sm:$0xff]
    %v704 = vld [vmem:[%s10] sm:$0x1]
    %v706 = vlaneseq
    %v707 = vshrl.u32 %v706, 7
    %v708 = vsub.s32 0, %v707
    %v709 = vrot.slane %v704, %v708
    %v712 = vsel %vm599, %v695, 0
    %714 = vmatprep.subr.mxu0 0.0
    %715 = vmatpush1.msra.mxu0 %v696
    %716 = vmatprep.subr.mxu0 0.0
    %717 = vmatpush1.msra.mxu0 %v697
    %718 = vmatprep.subr.mxu0 0.0
    %719 = vmatpush1.msra.mxu0 %v698
    %720 = vmatprep.subr.mxu0 0.0
    %721 = vmatpush1.msra.mxu0 %v699
    %722 = vmatprep.subr.mxu0 0.0
    %723 = vmatpush1.msra.mxu0 %v700
    %724 = vmatprep.subr.mxu0 0.0
    %725 = vmatpush1.msra.mxu0 %v701
    %726 = vmatprep.subr.mxu0 0.0
    %727 = vmatpush1.msra.mxu0 %v702
    %728 = vmatprep.subr.mxu0 0.0
    %729 = vmatpush1.msra.mxu0 %v703
    %730 = vmatprep.subr.mxu0 0.0
    %731 = vmatpush1.msra.mxu0 0.0
    %732 = vmatprep.subr.mxu0 0.0
    %733 = vmatpush1.msra.mxu0 0.0
    %734 = vmatprep.subr.mxu0 0.0
    %735 = vmatpush1.msra.mxu0 0.0
    %736 = vmatprep.subr.mxu0 0.0
    %737 = vmatpush1.msra.mxu0 0.0
    %738 = vmatprep.subr.mxu0 0.0
    %739 = vmatpush1.msra.mxu0 0.0
    %740 = vmatprep.subr.mxu0 0.0
    %741 = vmatpush1.msra.mxu0 0.0
    %742 = vmatprep.subr.mxu0 0.0
    %743 = vmatpush1.msra.mxu0 0.0
    %744 = vmatprep.subr.mxu0 0.0
    %745 = vmatpush1.msra.mxu0 0.0
    %746 = vmatprep.subr.mxu0 0.0
    %747 = vmatpush1.msra.mxu0 0.0
    %748 = vmatprep.subr.mxu0 0.0
    %749 = vmatpush1.msra.mxu0 0.0
    %750 = vmatprep.subr.mxu0 0.0
    %751 = vmatpush1.msra.mxu0 0.0
    %752 = vmatprep.subr.mxu0 0.0
    %753 = vmatpush1.msra.mxu0 0.0
    %754 = vmatprep.subr.mxu0 0.0
    %755 = vmatpush1.msra.mxu0 0.0
    %756 = vmatprep.subr.mxu0 0.0
    %757 = vmatpush1.msra.mxu0 0.0
    %758 = vmatprep.subr.mxu0 0.0
    %759 = vmatpush1.msra.mxu0 0.0
    %760 = vmatprep.subr.mxu0 0.0
    %761 = vmatpush1.msra.mxu0 0.0
    %762 = vmatprep.subr.mxu0 0.0
    %763 = vmatpush1.msra.mxu0 0.0
    %764 = vmatprep.subr.mxu0 0.0
    %765 = vmatpush1.msra.mxu0 0.0
    %766 = vmatprep.subr.mxu0 0.0
    %767 = vmatpush1.msra.mxu0 0.0
    %768 = vmatprep.subr.mxu0 0.0
    %769 = vmatpush1.msra.mxu0 0.0
    %770 = vmatprep.subr.mxu0 0.0
    %771 = vmatpush1.msra.mxu0 0.0
    %772 = vmatprep.subr.mxu0 0.0
    %773 = vmatpush1.msra.mxu0 0.0
    %774 = vmatprep.subr.mxu0 0.0
    %775 = vmatpush1.msra.mxu0 0.0
    %776 = vmatprep.subr.mxu0 0.0
    %777 = vmatpush1.msra.mxu0 0.0
    %778 = vmatprep.mubr.f32.mxu0 0.0
    %779 = vmatmul.mubr.f32.gmra.mrb[0].mxu0 %v712
    %v780 = vpop.f32.mrb[0].mxu0
    %v781 = vadd.f32 %v709, %v780
    %v782 = vpop.f32.mrb[0].mxu0
    %783 = vdwg.mxu0
    %vm784 = vcmp.gt.f32.partialorder %v40, 0.0
    %786 = vrot.lane.b32.xlu0 %v781, 127
    %v787 = vpop.permute.xlu0 %786
    %v789 = vsel %vm784, %v787, %v781
    %790 = vst [vmem:[#allocation2] sm:$0xff] 0.0
    %791 = vst.msk [vmem:[#allocation2] sm:$0xff] %vm599, %v594
    %793 = vrot.lane.b32.xlu0 %v789, 2
    %v794 = vpop.permute.xlu0 %793
    %vm796 = vcmask 15360
    %v797 = vsel %vm796, %v781, %v794
    %799 = vrot.lane.b32.xlu0 %v797, 64
    %v800 = vpop.permute.xlu0 %799
    %vm802 = vcmask 548352
    %803 = vst.msk [vmem:[#allocation2] sm:$0xff] %vm802, %v800
    // Predicated region
    $region46: #{tpu_custom_call.1} parent=1 // pred_check
      _
    $region47: #{tpu_custom_call.1} parent=1 // pred_check_branch
      %805 = sbr.rel (0) target = $region49
    $region48: #{tpu_custom_call.1} parent=1 // pred_region
      %s807 = ssub.s32 128, 128
      %808 = vsyncadd [#allocation3], %s807
      %s810 = sshll.u32 [#allocation2], 4
      %s811 = int_to_ptr.vmem [resolvable:$true] %s810
      %813 = dma.vmem_to_hbm [thread:$0]  %s811, 128, %s11, [#allocation3]
    $region49: #{tpu_custom_call.1} parent=1 // pred_fallthru
      _
    // Predicated region
    $region50: #{tpu_custom_call.1} parent=1 // pred_check
      _
    $region51: #{tpu_custom_call.1} parent=1 // pred_check_branch
      %815 = sbr.rel (0) target = $region53
    $region52: #{tpu_custom_call.1} parent=1 // pred_region
      %816 = dma.done [#allocation3], 128
    $region53: #{tpu_custom_call.1} parent=1 // pred_fallthru
      _
    %817 = vsyncpa [#allocation3], 1

</llo_original>
